<compile_context>
chip_gen: v6e
topology: v6e:2x2x1
jax: 0.10.0
libtpu: 0.0.40
codegen_flags: <defaults>
</compile_context>

<pallas_src>
import functools

import jax
import jax.numpy as jnp
from jax import lax
from jax.experimental import pallas as pl
from jax.experimental.pallas import tpu as pltpu


# Contract the last dim of both operands: (M, K) x (N, K) -> (M, N)  ("NT" matmul).
_NT_DIMS = (((1,), (1,)), ((), ()))


def _round_up(x, m):
    return ((x + m - 1) // m) * m


# ----------------------------------------------------------------------------
# Elementwise ARD transform on a (tn, tk) weight tile (bf16 in, bf16 out).
# ----------------------------------------------------------------------------
def _ard_effective_weight(w, ls2, eps, *, thresh, training, clamp):
    if training:
        w32 = w.astype(jnp.float32)
        we = w32 + eps.astype(jnp.float32) * jnp.exp(0.5 * ls2.astype(jnp.float32))
        return we.astype(jnp.bfloat16)
    # eval: drop weights whose log_alpha >= thresh
    w32 = w.astype(jnp.float32)
    log_alpha = ls2.astype(jnp.float32) - 2.0 * jnp.log(jnp.abs(w32) + 1e-15)
    if clamp:  # only needed when thresh lies outside (-10, 10); otherwise equivalent
        log_alpha = jnp.clip(log_alpha, -10.0, 10.0)
    return jnp.where(log_alpha >= thresh, jnp.zeros_like(w), w)


# ----------------------------------------------------------------------------
# Kernel 1: (optionally ARD-fused) tiled matmul + bias, K-last accumulation.
# ----------------------------------------------------------------------------
def _linear_kernel(*refs, thresh, training, clamp, fuse_ard):
    if fuse_ard and training:
        x_ref, w_ref, ls2_ref, eps_ref, b_ref, o_ref, acc_ref = refs
    elif fuse_ard:
        x_ref, w_ref, ls2_ref, b_ref, o_ref, acc_ref = refs
        eps_ref = None
    else:
        x_ref, w_ref, b_ref, o_ref, acc_ref = refs

    k = pl.program_id(2)

    @pl.when(k == 0)
    def _():
        acc_ref[...] = jnp.zeros_like(acc_ref)

    if fuse_ard:
        w_eff = _ard_effective_weight(
            w_ref[...], ls2_ref[...],
            eps_ref[...] if training else None,
            thresh=thresh, training=training, clamp=clamp)
    else:
        w_eff = w_ref[...]  # already the effective weight (precomputed, bf16)

    # x tile (tm, tk) bf16  x  W_eff tile (tn, tk) bf16  -> (tm, tn) f32 on the MXU.
    acc_ref[...] += lax.dot_general(
        x_ref[...], w_eff, _NT_DIMS, preferred_element_type=jnp.float32)

    @pl.when(k == pl.num_programs(2) - 1)
    def _():
        o_ref[...] = acc_ref[...] + b_ref[...]


# ----------------------------------------------------------------------------
# Kernel 2: standalone elementwise W_eff pass (used when there are >1 M-tiles,
# so the ARD transform + extra weight streams are not repeated per M-tile).
# ----------------------------------------------------------------------------
def _weff_kernel(*refs, thresh, training, clamp):
    if training:
        w_ref, ls2_ref, eps_ref, o_ref = refs
        eps = eps_ref[...]
    else:
        w_ref, ls2_ref, o_ref = refs
        eps = None
    o_ref[...] = _ard_effective_weight(
        w_ref[...], ls2_ref[...], eps, thresh=thresh, training=training, clamp=clamp)


# ----------------------------------------------------------------------------
# Wrapper: padding / tiling / BlockSpecs / path selection.
# ----------------------------------------------------------------------------
def linear_ard_forward(x, weight, log_sigma2, bias, *, thresh=3.0,
                       training=False, epsilon=None,
                       block_m=512, block_n=256, block_k=1024):
    """x: (..., in_features); weight/log_sigma2[/epsilon]: (out, in); bias: (out,)."""
    if training and epsilon is None:
        raise ValueError("training=True requires an explicit epsilon of weight.shape")

    lead = x.shape[:-1]
    K = x.shape[-1]
    N = weight.shape[0]

    # Stream everything bf16 (MXU consumes bf16 anyway); natural (N, K) weight
    # layout — no wrapper transpose. (Callers may pre-cast params to bf16 once.)
    x2 = x.reshape(-1, K).astype(jnp.bfloat16)
    w = weight.astype(jnp.bfloat16)
    ls2 = log_sigma2.astype(jnp.bfloat16)
    eps = epsilon.astype(jnp.bfloat16) if training else None
    M = x2.shape[0]

    tm = min(block_m, _round_up(M, 8))
    tn = min(block_n, _round_up(N, 128))
    tk = min(block_k, _round_up(K, 128))
    Mp, Np, Kp = _round_up(M, tm), _round_up(N, tn), _round_up(K, tk)

    # v7x megacore: try to guarantee >= 2 parallel output tiles when shape allows.
    if (Mp // tm) * (Np // tn) == 1 and tn > 128:
        tn = max(128, _round_up(tn // 2, 128))
        Np = _round_up(N, tn)
    if (Mp // tm) * (Np // tn) == 1 and tm > 8:
        tm = max(8, _round_up(tm // 2, 8))
        Mp = _round_up(M, tm)

    # Zero padding is exact: padded weight rows/cols give W_eff == 0 in both modes,
    # padded x columns contribute 0, padded outputs are sliced off below.
    x2 = jnp.pad(x2, ((0, Mp - M), (0, Kp - K)))
    w = jnp.pad(w, ((0, Np - N), (0, Kp - K)))
    ls2 = jnp.pad(ls2, ((0, Np - N), (0, Kp - K)))
    if training:
        eps = jnp.pad(eps, ((0, Np - N), (0, Kp - K)))
    b2 = jnp.pad(bias.astype(jnp.float32), (0, Np - N)).reshape(1, Np)

    clamp = not (-10.0 < float(thresh) < 10.0)  # drop redundant clamp otherwise
    m_tiles, n_tiles, k_tiles = Mp // tm, Np // tn, Kp // tk
    fuse_ard = (m_tiles == 1)

    if not fuse_ard:
        # Precompute W_eff once (bf16) so it is not recomputed per M-tile.
        weff_spec = pl.BlockSpec((tn, tk), lambda j, k: (j, k))
        weff_inputs = [w, ls2] + ([eps] if training else [])
        w = pl.pallas_call(
            functools.partial(_weff_kernel, thresh=float(thresh),
                              training=training, clamp=clamp),
            out_shape=jax.ShapeDtypeStruct((Np, Kp), jnp.bfloat16),
            grid=(n_tiles, k_tiles),
            in_specs=[weff_spec] * len(weff_inputs),
            out_specs=weff_spec,
            compiler_params=pltpu.CompilerParams(
                dimension_semantics=("parallel", "parallel")),
        )(*weff_inputs)

    grid = (m_tiles, n_tiles, k_tiles)
    w_spec = pl.BlockSpec((tn, tk), lambda i, j, k: (j, k))
    in_specs = [pl.BlockSpec((tm, tk), lambda i, j, k: (i, k)), w_spec]
    inputs = [x2, w]
    if fuse_ard:
        in_specs.append(w_spec); inputs.append(ls2)
        if training:
            in_specs.append(w_spec); inputs.append(eps)
    in_specs.append(pl.BlockSpec((1, tn), lambda i, j, k: (0, j)))  # bias row
    inputs.append(b2)

    w_streams = (3 if training else 2) if fuse_ard else 1
    cost = pl.CostEstimate(
        flops=2 * M * N * K,
        transcendentals=(N * K) if fuse_ard else 0,
        bytes_accessed=2 * (M * K + w_streams * N * K) + 4 * M * N,
    )

    out = pl.pallas_call(
        functools.partial(_linear_kernel, thresh=float(thresh),
                          training=training, clamp=clamp, fuse_ard=fuse_ard),
        out_shape=jax.ShapeDtypeStruct((Mp, Np), jnp.float32),
        grid_spec=pltpu.PrefetchScalarGridSpec(
            num_scalar_prefetch=0,
            grid=grid,
            in_specs=in_specs,
            out_specs=pl.BlockSpec((tm, tn), lambda i, j, k: (i, j)),
            scratch_shapes=[pltpu.VMEM((tm, tn), jnp.float32)],
        ),
        compiler_params=pltpu.CompilerParams(
            dimension_semantics=("parallel", "parallel", "arbitrary")),
        cost_estimate=cost,
    )(*inputs)

    return out[:M, :N].reshape(*lead, N)


# TODO(synk): get_reg() / get_dropped_params_cnt() are training-time diagnostics
#             (KL regularizer, sparsity count) and not part of forward(); omitted.


if __name__ == "__main__":
    key = jax.random.PRNGKey(0)
    k_w, k_x, k_eps, k_x2 = jax.random.split(key, 4)

    in_features, out_features = 256, 128
    thresh, ard_init = 3.0, -10.0

    # Same init as LinearARD.reset_parameters()
    weight = 0.02 * jax.random.normal(k_w, (out_features, in_features), jnp.float32)
    bias = jnp.zeros((out_features,), jnp.float32)
    log_sigma2 = jnp.full((out_features, in_features), ard_init, jnp.float32)
    epsilon = jax.random.normal(k_eps, (out_features, in_features), jnp.float32)

    # f32 references (PyTorch semantics)
    log_alpha = jnp.clip(log_sigma2 - 2.0 * jnp.log(jnp.abs(weight) + 1e-15), -10.0, 10.0)
    w_clip = jnp.where(log_alpha >= thresh, jnp.zeros_like(weight), weight)
    w_train = weight + epsilon * jnp.exp(0.5 * log_sigma2)

    tol = 5e-2  # bf16-operand tolerance

    # ---- fused single-pass path (one M-tile): batch = 8 -------------------------
    x = jax.random.normal(k_x, (8, in_features), jnp.float32)

    fwd_eval = jax.jit(functools.partial(linear_ard_forward, thresh=thresh, training=False))
    out_eval = jax.block_until_ready(fwd_eval(x, weight, log_sigma2, bias))
    assert out_eval.shape == (8, out_features), out_eval.shape
    err = float(jnp.max(jnp.abs(out_eval - (x @ w_clip.T + bias))))
    assert err < tol, f"eval (fused) max abs err {err}"

    fwd_train = jax.jit(functools.partial(linear_ard_forward, thresh=thresh, training=True))
    out_train = jax.block_until_ready(fwd_train(x, weight, log_sigma2, bias, epsilon=epsilon))
    err = float(jnp.max(jnp.abs(out_train - (x @ w_train.T + bias))))
    assert err < tol, f"train (fused) max abs err {err}"

    # ---- two-pass path (multiple M-tiles -> W_eff precomputed once): batch = 16 --
    xb = jax.random.normal(k_x2, (16, in_features), jnp.float32)

    fwd_eval2 = jax.jit(functools.partial(linear_ard_forward, thresh=thresh,
                                          training=False, block_m=8))
    out_eval2 = jax.block_until_ready(fwd_eval2(xb, weight, log_sigma2, bias))
    err = float(jnp.max(jnp.abs(out_eval2 - (xb @ w_clip.T + bias))))
    assert err < tol, f"eval (two-pass) max abs err {err}"

    fwd_train2 = jax.jit(functools.partial(linear_ard_forward, thresh=thresh,
                                           training=True, block_m=8))
    out_train2 = jax.block_until_ready(fwd_train2(xb, weight, log_sigma2, bias, epsilon=epsilon))
    err = float(jnp.max(jnp.abs(out_train2 - (xb @ w_train.T + bias))))
    assert err < tol, f"train (two-pass) max abs err {err}"

    print("KERNEL_OK")
</pallas_src>

<mosaic_0001>
module attributes {stable_mosaic.version = 11 : i64} {
  func.func @_linear_kernel(%arg0: i32, %arg1: i32, %arg2: i32, %arg3: memref<8x256xbf16, #tpu.memory_space<vmem>>, %arg4: memref<128x256xbf16, #tpu.memory_space<vmem>>, %arg5: memref<128x256xbf16, #tpu.memory_space<vmem>>, %arg6: memref<1x128xf32, #tpu.memory_space<vmem>>, %arg7: memref<8x128xf32, #tpu.memory_space<vmem>>, %arg8: memref<8x128xf32, #tpu.memory_space<vmem>>) attributes {dimension_semantics = [#tpu.dimension_semantics<parallel>, #tpu.dimension_semantics<parallel>, #tpu.dimension_semantics<arbitrary>], iteration_bounds = array<i64: 1, 1, 1>, scalar_prefetch = 0 : i64, scratch_operands = 1 : i64, tpu.core_type = #tpu.core_type<tc>, window_params = [{transform_indices = @transform_0, window_bounds = array<i64: 8, 256>}, {transform_indices = @transform_1, window_bounds = array<i64: 128, 256>}, {transform_indices = @transform_2, window_bounds = array<i64: 128, 256>}, {transform_indices = @transform_3, window_bounds = array<i64: 1, 128>}, {transform_indices = @transform_4, window_bounds = array<i64: 8, 128>}]} {
    %c0_i32 = arith.constant 0 : i32
    %0 = arith.cmpi eq, %arg2, %c0_i32 : i32
    %1 = arith.extui %0 : i1 to i32
    %c0_i32_0 = arith.constant 0 : i32
    %2 = arith.cmpi ne, %1, %c0_i32_0 : i32
    scf.if %2 {
      %cst_16 = arith.constant 0.000000e+00 : f32
      %26 = vector.broadcast %cst_16 : f32 to vector<8x128xf32>
      %c0_17 = arith.constant 0 : index
      %c0_18 = arith.constant 0 : index
      %27 = vector.load %arg8[%c0_17, %c0_18] : memref<8x128xf32, #tpu.memory_space<vmem>>, vector<8x128xf32>
      tpu.vector_store %arg8[%c0_17, %c0_18], %26 {strides = array<i32>} : memref<8x128xf32, #tpu.memory_space<vmem>>, vector<8x128xf32>,
    } else {
    }
    %c0 = arith.constant 0 : index
    %c0_1 = arith.constant 0 : index
    %3 = vector.load %arg4[%c0, %c0_1] : memref<128x256xbf16, #tpu.memory_space<vmem>>, vector<128x256xbf16>
    %c0_2 = arith.constant 0 : index
    %c0_3 = arith.constant 0 : index
    %4 = vector.load %arg5[%c0_2, %c0_3] : memref<128x256xbf16, #tpu.memory_space<vmem>>, vector<128x256xbf16>
    %5 = arith.extf %3 : vector<128x256xbf16> to vector<128x256xf32>
    %6 = arith.extf %4 : vector<128x256xbf16> to vector<128x256xf32>
    %7 = math.absf %5 : vector<128x256xf32>
    %cst = arith.constant 1.000000e-15 : f32
    %8 = vector.broadcast %cst : f32 to vector<128x256xf32>
    %9 = arith.addf %7, %8 : vector<128x256xf32>
    %10 = math.log %9 : vector<128x256xf32>
    %cst_4 = arith.constant 2.000000e+00 : f32
    %11 = vector.broadcast %cst_4 : f32 to vector<128x256xf32>
    %12 = arith.mulf %11, %10 : vector<128x256xf32>
    %13 = arith.subf %6, %12 : vector<128x256xf32>
    %cst_5 = arith.constant 3.000000e+00 : f32
    %14 = vector.broadcast %cst_5 : f32 to vector<128x256xf32>
    %15 = arith.cmpf oge, %13, %14 : vector<128x256xf32>
    %cst_6 = arith.constant 0.000000e+00 : bf16
    %16 = vector.broadcast %cst_6 : bf16 to vector<128x256xbf16>
    %17 = arith.select %15, %16, %3 : vector<128x256xi1>, vector<128x256xbf16>
    %c0_7 = arith.constant 0 : index
    %c0_8 = arith.constant 0 : index
    %18 = vector.load %arg8[%c0_7, %c0_8] : memref<8x128xf32, #tpu.memory_space<vmem>>, vector<8x128xf32>
    %c0_9 = arith.constant 0 : index
    %c0_10 = arith.constant 0 : index
    %19 = vector.load %arg3[%c0_9, %c0_10] : memref<8x256xbf16, #tpu.memory_space<vmem>>, vector<8x256xbf16>
    %cst_11 = arith.constant dense<0.000000e+00> : vector<8x128xf32>
    %20 = tpu.matmul %19, %17, %cst_11 {dimension_numbers = #tpu.dot_dimension_numbers<[1], [1], [0], [0], [0, 0, 1, 0], [], []>} : vector<8x256xbf16>, vector<128x256xbf16>, vector<8x128xf32> -> vector<8x128xf32>
    %21 = arith.addf %18, %20 : vector<8x128xf32>
    %c0_12 = arith.constant 0 : index
    %c0_13 = arith.constant 0 : index
    %22 = vector.load %arg8[%c0_12, %c0_13] : memref<8x128xf32, #tpu.memory_space<vmem>>, vector<8x128xf32>
    tpu.vector_store %arg8[%c0_12, %c0_13], %21 {strides = array<i32>} : memref<8x128xf32, #tpu.memory_space<vmem>>, vector<8x128xf32>,
    %c0_i32_14 = arith.constant 0 : i32
    %23 = arith.cmpi eq, %arg2, %c0_i32_14 : i32
    %24 = arith.extui %23 : i1 to i32
    %c0_i32_15 = arith.constant 0 : i32
    %25 = arith.cmpi ne, %24, %c0_i32_15 : i32
    scf.if %25 {
      %c0_16 = arith.constant 0 : index
      %c0_17 = arith.constant 0 : index
      %26 = vector.load %arg8[%c0_16, %c0_17] : memref<8x128xf32, #tpu.memory_space<vmem>>, vector<8x128xf32>
      %c0_18 = arith.constant 0 : index
      %c0_19 = arith.constant 0 : index
      %27 = vector.load %arg6[%c0_18, %c0_19] : memref<1x128xf32, #tpu.memory_space<vmem>>, vector<1x128xf32>
      %28 = vector.broadcast %27 : vector<1x128xf32> to vector<8x128xf32>
      %29 = arith.addf %26, %28 : vector<8x128xf32>
      %c0_20 = arith.constant 0 : index
      %c0_21 = arith.constant 0 : index
      %30 = vector.load %arg7[%c0_20, %c0_21] : memref<8x128xf32, #tpu.memory_space<vmem>>, vector<8x128xf32>
      tpu.vector_store %arg7[%c0_20, %c0_21], %29 {strides = array<i32>} : memref<8x128xf32, #tpu.memory_space<vmem>>, vector<8x128xf32>,
    } else {
    }
    return
  }
  func.func @transform_0(%arg0: i32, %arg1: i32, %arg2: i32) -> (i32, i32) {
    %c0_i32 = arith.constant 0 : i32
    return %arg0, %arg2 : i32, i32
  }
  func.func @transform_1(%arg0: i32, %arg1: i32, %arg2: i32) -> (i32, i32) {
    %c0_i32 = arith.constant 0 : i32
    return %arg1, %arg2 : i32, i32
  }
  func.func @transform_2(%arg0: i32, %arg1: i32, %arg2: i32) -> (i32, i32) {
    %c0_i32 = arith.constant 0 : i32
    return %arg1, %arg2 : i32, i32
  }
  func.func @transform_3(%arg0: i32, %arg1: i32, %arg2: i32) -> (i32, i32) {
    %c0_i32 = arith.constant 0 : i32
    %c0_i32_0 = arith.constant 0 : i32
    return %c0_i32, %arg1 : i32, i32
  }
  func.func @transform_4(%arg0: i32, %arg1: i32, %arg2: i32) -> (i32, i32) {
    %c0_i32 = arith.constant 0 : i32
    return %arg0, %arg1 : i32, i32
  }
}

</mosaic_0001>

<llo_original>
// kernel: linear_ard_forward.1
$region0: #{linear_ard_forward.1}
  #allocation0 [shape = 'u32[]', space=smem, size = 0x4, offset = 0x4, fixed_abs, tag = 'smem constant byte address 0x4 - core index']
  #allocation1 [shape = 'u32[144,128]{1,0:T(1,128)}', space=vmem, size = 0x12000, scoped, tag = 'internal scratch']
  #allocation2 [shape = 'f32[8,128]{1,0:T(8,128)}', space=vmem, size = 0x1000, scoped, tag = 'scratch operand']
  %s0 = inlined_call_operand.vmem [shape: bf16[8,256], index: 0, kind: input, shape index: {}]
  %s1 = inlined_call_operand.vmem [shape: bf16[128,256], index: 1, kind: input, shape index: {}]
  %s2 = inlined_call_operand.vmem [shape: bf16[128,256], index: 2, kind: input, shape index: {}]
  %s3 = inlined_call_operand.vmem [shape: f32[1,128], index: 3, kind: input, shape index: {}]
  %s4 = inlined_call_operand.hbm [shape: f32[8,128], index: 4, kind: output, shape index: {}]
  %s5 = sld [smem:[#allocation0]]
  $region34: #{linear_ard_forward.1} parent=0
    _
  %s7 = ssub.s32 1, %s5
  %s8 = scalar_select 0, %s7, %s5
  $region1: #{linear_ard_forward.1} parent=0
    #allocation3 [shape = 'u8[4096]{0}', space=vmem, size = 0x1000, scoped, tag = 'output window, operand 0, single buffered']
    #allocation4 [shape = 's32[1]{0}', space=sflag, size = 0x4, scoped, tag = 'scoped memory for linear_ard_forward.1']
    %9 = vsyncpa [#allocation4], 0
    // Predicated region
    $region2: #{linear_ard_forward.1} parent=1 // pred_check
      _
    $region3: #{linear_ard_forward.1} parent=1 // pred_check_branch
      %11 = sbr.rel (0) target = $region5
    $region4: #{linear_ard_forward.1} parent=1 // pred_region
      _
    $region5: #{linear_ard_forward.1} parent=1 // pred_fallthru
      _
    // Predicated region
    $region6: #{linear_ard_forward.1} parent=1 // pred_check
      _
    $region7: #{linear_ard_forward.1} parent=1 // pred_check_branch
      %13 = sbr.rel (0) target = $region9
    $region8: #{linear_ard_forward.1} parent=1 // pred_region
      _
    $region9: #{linear_ard_forward.1} parent=1 // pred_fallthru
      _
    // Predicated region
    $region10: #{linear_ard_forward.1} parent=1 // pred_check
      _
    $region11: #{linear_ard_forward.1} parent=1 // pred_check_branch
      %15 = sbr.rel (0) target = $region13
    $region12: #{linear_ard_forward.1} parent=1 // pred_region
      _
    $region13: #{linear_ard_forward.1} parent=1 // pred_fallthru
      _
    // Predicated region
    $region14: #{linear_ard_forward.1} parent=1 // pred_check
      _
    $region15: #{linear_ard_forward.1} parent=1 // pred_check_branch
      %17 = sbr.rel (0) target = $region17
    $region16: #{linear_ard_forward.1} parent=1 // pred_region
      _
    $region17: #{linear_ard_forward.1} parent=1 // pred_fallthru
      _
    %p19 = scmp.eq.s32.totalorder 0, 0
    // Predicated region
    $region18: #{linear_ard_forward.1} parent=1 // pred_check
      %p20 = pneg %p19
    $region19: #{linear_ard_forward.1} parent=1 // pred_check_branch
      %22 = sbr.rel (%p20) target = $region21
    $region20: #{linear_ard_forward.1} parent=1 // pred_region
      %23 = vst [vmem:[#allocation2] sm:$0xff] 0.0
    $region21: #{linear_ard_forward.1} parent=1 // pred_fallthru
      _
    %v24 = vld [vmem:[%s1] sm:$0xff]
    %v25 = vld [vmem:[%s1 + $0x8] sm:$0xff]
    %v26 = vld [vmem:[%s1 + $0x10] sm:$0xff]
    %v27 = vld [vmem:[%s1 + $0x18] sm:$0xff]
    %v28 = vld [vmem:[%s1 + $0x20] sm:$0xff]
    %v29 = vld [vmem:[%s1 + $0x28] sm:$0xff]
    %v30 = vld [vmem:[%s1 + $0x30] sm:$0xff]
    %v31 = vld [vmem:[%s1 + $0x38] sm:$0xff]
    %v32 = vld [vmem:[%s1 + $0x40] sm:$0xff]
    %v33 = vld [vmem:[%s1 + $0x48] sm:$0xff]
    %v34 = vld [vmem:[%s1 + $0x50] sm:$0xff]
    %v35 = vld [vmem:[%s1 + $0x58] sm:$0xff]
    %v36 = vld [vmem:[%s1 + $0x60] sm:$0xff]
    %v37 = vld [vmem:[%s1 + $0x68] sm:$0xff]
    %v38 = vld [vmem:[%s1 + $0x70] sm:$0xff]
    %v39 = vld [vmem:[%s1 + $0x78] sm:$0xff]
    %v40 = vld [vmem:[%s2] sm:$0xff]
    %v41 = vld [vmem:[%s2 + $0x8] sm:$0xff]
    %v42 = vld [vmem:[%s2 + $0x10] sm:$0xff]
    %v43 = vld [vmem:[%s2 + $0x18] sm:$0xff]
    %v44 = vld [vmem:[%s2 + $0x20] sm:$0xff]
    %v45 = vld [vmem:[%s2 + $0x28] sm:$0xff]
    %v46 = vld [vmem:[%s2 + $0x30] sm:$0xff]
    %v47 = vld [vmem:[%s2 + $0x38] sm:$0xff]
    %v48 = vld [vmem:[%s2 + $0x40] sm:$0xff]
    %v49 = vld [vmem:[%s2 + $0x48] sm:$0xff]
    %v50 = vld [vmem:[%s2 + $0x50] sm:$0xff]
    %v51 = vld [vmem:[%s2 + $0x58] sm:$0xff]
    %v52 = vld [vmem:[%s2 + $0x60] sm:$0xff]
    %v53 = vld [vmem:[%s2 + $0x68] sm:$0xff]
    %v54 = vld [vmem:[%s2 + $0x70] sm:$0xff]
    %v55 = vld [vmem:[%s2 + $0x78] sm:$0xff]
    %v56 = vunpack.c.l.bf16 %v24
    %v57 = vunpack.c.h.bf16 %v24
    %v58 = vunpack.c.l.bf16 %v25
    %v59 = vunpack.c.h.bf16 %v25
    %v60 = vunpack.c.l.bf16 %v26
    %v61 = vunpack.c.h.bf16 %v26
    %v62 = vunpack.c.l.bf16 %v27
    %v63 = vunpack.c.h.bf16 %v27
    %v64 = vunpack.c.l.bf16 %v28
    %v65 = vunpack.c.h.bf16 %v28
    %v66 = vunpack.c.l.bf16 %v29
    %v67 = vunpack.c.h.bf16 %v29
    %v68 = vunpack.c.l.bf16 %v30
    %v69 = vunpack.c.h.bf16 %v30
    %v70 = vunpack.c.l.bf16 %v31
    %v71 = vunpack.c.h.bf16 %v31
    %v72 = vunpack.c.l.bf16 %v32
    %v73 = vunpack.c.h.bf16 %v32
    %v74 = vunpack.c.l.bf16 %v33
    %v75 = vunpack.c.h.bf16 %v33
    %v76 = vunpack.c.l.bf16 %v34
    %v77 = vunpack.c.h.bf16 %v34
    %v78 = vunpack.c.l.bf16 %v35
    %v79 = vunpack.c.h.bf16 %v35
    %v80 = vunpack.c.l.bf16 %v36
    %v81 = vunpack.c.h.bf16 %v36
    %v82 = vunpack.c.l.bf16 %v37
    %v83 = vunpack.c.h.bf16 %v37
    %v84 = vunpack.c.l.bf16 %v38
    %v85 = vunpack.c.h.bf16 %v38
    %v86 = vunpack.c.l.bf16 %v39
    %v87 = vunpack.c.h.bf16 %v39
    %v88 = vunpack.c.l.bf16 %v40
    %v89 = vunpack.c.h.bf16 %v40
    %v90 = vunpack.c.l.bf16 %v41
    %v91 = vunpack.c.h.bf16 %v41
    %v92 = vunpack.c.l.bf16 %v42
    %v93 = vunpack.c.h.bf16 %v42
    %v94 = vunpack.c.l.bf16 %v43
    %v95 = vunpack.c.h.bf16 %v43
    %v96 = vunpack.c.l.bf16 %v44
    %v97 = vunpack.c.h.bf16 %v44
    %v98 = vunpack.c.l.bf16 %v45
    %v99 = vunpack.c.h.bf16 %v45
    %v100 = vunpack.c.l.bf16 %v46
    %v101 = vunpack.c.h.bf16 %v46
    %v102 = vunpack.c.l.bf16 %v47
    %v103 = vunpack.c.h.bf16 %v47
    %v104 = vunpack.c.l.bf16 %v48
    %v105 = vunpack.c.h.bf16 %v48
    %v106 = vunpack.c.l.bf16 %v49
    %v107 = vunpack.c.h.bf16 %v49
    %v108 = vunpack.c.l.bf16 %v50
    %v109 = vunpack.c.h.bf16 %v50
    %v110 = vunpack.c.l.bf16 %v51
    %v111 = vunpack.c.h.bf16 %v51
    %v112 = vunpack.c.l.bf16 %v52
    %v113 = vunpack.c.h.bf16 %v52
    %v114 = vunpack.c.l.bf16 %v53
    %v115 = vunpack.c.h.bf16 %v53
    %v116 = vunpack.c.l.bf16 %v54
    %v117 = vunpack.c.h.bf16 %v54
    %v118 = vunpack.c.l.bf16 %v55
    %v119 = vunpack.c.h.bf16 %v55
    %v120 = vand.u32 2147483647, %v56
    %v121 = vand.u32 2147483647, %v57
    %v122 = vand.u32 2147483647, %v58
    %v123 = vand.u32 2147483647, %v59
    %v124 = vand.u32 2147483647, %v60
    %v125 = vand.u32 2147483647, %v61
    %v126 = vand.u32 2147483647, %v62
    %v127 = vand.u32 2147483647, %v63
    %v128 = vand.u32 2147483647, %v64
    %v129 = vand.u32 2147483647, %v65
    %v130 = vand.u32 2147483647, %v66
    %v131 = vand.u32 2147483647, %v67
    %v132 = vand.u32 2147483647, %v68
    %v133 = vand.u32 2147483647, %v69
    %v134 = vand.u32 2147483647, %v70
    %v135 = vand.u32 2147483647, %v71
    %v136 = vand.u32 2147483647, %v72
    %v137 = vand.u32 2147483647, %v73
    %v138 = vand.u32 2147483647, %v74
    %v139 = vand.u32 2147483647, %v75
    %v140 = vand.u32 2147483647, %v76
    %v141 = vand.u32 2147483647, %v77
    %v142 = vand.u32 2147483647, %v78
    %v143 = vand.u32 2147483647, %v79
    %v144 = vand.u32 2147483647, %v80
    %v145 = vand.u32 2147483647, %v81
    %v146 = vand.u32 2147483647, %v82
    %v147 = vand.u32 2147483647, %v83
    %v148 = vand.u32 2147483647, %v84
    %v149 = vand.u32 2147483647, %v85
    %v150 = vand.u32 2147483647, %v86
    %v151 = vand.u32 2147483647, %v87
    %v152 = vadd.f32 %v120, 1e-15
    %v153 = vadd.f32 %v121, 1e-15
    %v154 = vadd.f32 %v122, 1e-15
    %v155 = vadd.f32 %v123, 1e-15
    %v156 = vadd.f32 %v124, 1e-15
    %v157 = vadd.f32 %v125, 1e-15
    %v158 = vadd.f32 %v126, 1e-15
    %v159 = vadd.f32 %v127, 1e-15
    %v160 = vadd.f32 %v128, 1e-15
    %v161 = vadd.f32 %v129, 1e-15
    %v162 = vadd.f32 %v130, 1e-15
    %v163 = vadd.f32 %v131, 1e-15
    %v164 = vadd.f32 %v132, 1e-15
    %v165 = vadd.f32 %v133, 1e-15
    %v166 = vadd.f32 %v134, 1e-15
    %v167 = vadd.f32 %v135, 1e-15
    %v168 = vadd.f32 %v136, 1e-15
    %v169 = vadd.f32 %v137, 1e-15
    %v170 = vadd.f32 %v138, 1e-15
    %v171 = vadd.f32 %v139, 1e-15
    %v172 = vadd.f32 %v140, 1e-15
    %v173 = vadd.f32 %v141, 1e-15
    %v174 = vadd.f32 %v142, 1e-15
    %v175 = vadd.f32 %v143, 1e-15
    %v176 = vadd.f32 %v144, 1e-15
    %v177 = vadd.f32 %v145, 1e-15
    %v178 = vadd.f32 %v146, 1e-15
    %v179 = vadd.f32 %v147, 1e-15
    %v180 = vadd.f32 %v148, 1e-15
    %v181 = vadd.f32 %v149, 1e-15
    %v182 = vadd.f32 %v150, 1e-15
    %v183 = vadd.f32 %v151, 1e-15
    %v184 = vlog2.pop %v152
    %v185 = vmul.f32 %v184, 0.6931472
    %v186 = vlog2.pop %v153
    %v187 = vmul.f32 %v186, 0.6931472
    %v188 = vlog2.pop %v154
    %v189 = vmul.f32 %v188, 0.6931472
    %v190 = vlog2.pop %v155
    %v191 = vmul.f32 %v190, 0.6931472
    %v192 = vlog2.pop %v156
    %v193 = vmul.f32 %v192, 0.6931472
    %v194 = vlog2.pop %v157
    %v195 = vmul.f32 %v194, 0.6931472
    %v196 = vlog2.pop %v158
    %v197 = vmul.f32 %v196, 0.6931472
    %v198 = vlog2.pop %v159
    %v199 = vmul.f32 %v198, 0.6931472
    %v200 = vlog2.pop %v160
    %v201 = vmul.f32 %v200, 0.6931472
    %v202 = vlog2.pop %v161
    %v203 = vmul.f32 %v202, 0.6931472
    %v204 = vlog2.pop %v162
    %v205 = vmul.f32 %v204, 0.6931472
    %v206 = vlog2.pop %v163
    %v207 = vmul.f32 %v206, 0.6931472
    %v208 = vlog2.pop %v164
    %v209 = vmul.f32 %v208, 0.6931472
    %v210 = vlog2.pop %v165
    %v211 = vmul.f32 %v210, 0.6931472
    %v212 = vlog2.pop %v166
    %v213 = vmul.f32 %v212, 0.6931472
    %v214 = vlog2.pop %v167
    %v215 = vmul.f32 %v214, 0.6931472
    %v216 = vlog2.pop %v168
    %v217 = vmul.f32 %v216, 0.6931472
    %v218 = vlog2.pop %v169
    %v219 = vmul.f32 %v218, 0.6931472
    %v220 = vlog2.pop %v170
    %v221 = vmul.f32 %v220, 0.6931472
    %v222 = vlog2.pop %v171
    %v223 = vmul.f32 %v222, 0.6931472
    %v224 = vlog2.pop %v172
    %v225 = vmul.f32 %v224, 0.6931472
    %v226 = vlog2.pop %v173
    %v227 = vmul.f32 %v226, 0.6931472
    %v228 = vlog2.pop %v174
    %v229 = vmul.f32 %v228, 0.6931472
    %v230 = vlog2.pop %v175
    %v231 = vmul.f32 %v230, 0.6931472
    %v232 = vlog2.pop %v176
    %v233 = vmul.f32 %v232, 0.6931472
    %v234 = vlog2.pop %v177
    %v235 = vmul.f32 %v234, 0.6931472
    %v236 = vlog2.pop %v178
    %v237 = vmul.f32 %v236, 0.6931472
    %v238 = vlog2.pop %v179
    %v239 = vmul.f32 %v238, 0.6931472
    %v240 = vlog2.pop %v180
    %v241 = vmul.f32 %v240, 0.6931472
    %v242 = vlog2.pop %v181
    %v243 = vmul.f32 %v242, 0.6931472
    %v244 = vlog2.pop %v182
    %v245 = vmul.f32 %v244, 0.6931472
    %v246 = vlog2.pop %v183
    %v247 = vmul.f32 %v246, 0.6931472
    %v248 = vmul.f32 %v185, 2.0
    %v249 = vmul.f32 %v187, 2.0
    %v250 = vmul.f32 %v189, 2.0
    %v251 = vmul.f32 %v191, 2.0
    %v252 = vmul.f32 %v193, 2.0
    %v253 = vmul.f32 %v195, 2.0
    %v254 = vmul.f32 %v197, 2.0
    %v255 = vmul.f32 %v199, 2.0
    %v256 = vmul.f32 %v201, 2.0
    %v257 = vmul.f32 %v203, 2.0
    %v258 = vmul.f32 %v205, 2.0
    %v259 = vmul.f32 %v207, 2.0
    %v260 = vmul.f32 %v209, 2.0
    %v261 = vmul.f32 %v211, 2.0
    %v262 = vmul.f32 %v213, 2.0
    %v263 = vmul.f32 %v215, 2.0
    %v264 = vmul.f32 %v217, 2.0
    %v265 = vmul.f32 %v219, 2.0
    %v266 = vmul.f32 %v221, 2.0
    %v267 = vmul.f32 %v223, 2.0
    %v268 = vmul.f32 %v225, 2.0
    %v269 = vmul.f32 %v227, 2.0
    %v270 = vmul.f32 %v229, 2.0
    %v271 = vmul.f32 %v231, 2.0
    %v272 = vmul.f32 %v233, 2.0
    %v273 = vmul.f32 %v235, 2.0
    %v274 = vmul.f32 %v237, 2.0
    %v275 = vmul.f32 %v239, 2.0
    %v276 = vmul.f32 %v241, 2.0
    %v277 = vmul.f32 %v243, 2.0
    %v278 = vmul.f32 %v245, 2.0
    %v279 = vmul.f32 %v247, 2.0
    %v280 = vsub.f32 %v88, %v248
    %v281 = vsub.f32 %v89, %v249
    %v282 = vsub.f32 %v90, %v250
    %v283 = vsub.f32 %v91, %v251
    %v284 = vsub.f32 %v92, %v252
    %v285 = vsub.f32 %v93, %v253
    %v286 = vsub.f32 %v94, %v254
    %v287 = vsub.f32 %v95, %v255
    %v288 = vsub.f32 %v96, %v256
    %v289 = vsub.f32 %v97, %v257
    %v290 = vsub.f32 %v98, %v258
    %v291 = vsub.f32 %v99, %v259
    %v292 = vsub.f32 %v100, %v260
    %v293 = vsub.f32 %v101, %v261
    %v294 = vsub.f32 %v102, %v262
    %v295 = vsub.f32 %v103, %v263
    %v296 = vsub.f32 %v104, %v264
    %v297 = vsub.f32 %v105, %v265
    %v298 = vsub.f32 %v106, %v266
    %v299 = vsub.f32 %v107, %v267
    %v300 = vsub.f32 %v108, %v268
    %v301 = vsub.f32 %v109, %v269
    %v302 = vsub.f32 %v110, %v270
    %v303 = vsub.f32 %v111, %v271
    %v304 = vsub.f32 %v112, %v272
    %v305 = vsub.f32 %v113, %v273
    %v306 = vsub.f32 %v114, %v274
    %v307 = vsub.f32 %v115, %v275
    %v308 = vsub.f32 %v116, %v276
    %v309 = vsub.f32 %v117, %v277
    %v310 = vsub.f32 %v118, %v278
    %v311 = vsub.f32 %v119, %v279
    %vm312 = vcmp.ge.f32.partialorder %v280, 3.0
    %vm313 = vcmp.ge.f32.partialorder %v281, 3.0
    %vm314 = vcmp.ge.f32.partialorder %v282, 3.0
    %vm315 = vcmp.ge.f32.partialorder %v283, 3.0
    %vm316 = vcmp.ge.f32.partialorder %v284, 3.0
    %vm317 = vcmp.ge.f32.partialorder %v285, 3.0
    %vm318 = vcmp.ge.f32.partialorder %v286, 3.0
    %vm319 = vcmp.ge.f32.partialorder %v287, 3.0
    %vm320 = vcmp.ge.f32.partialorder %v288, 3.0
    %vm321 = vcmp.ge.f32.partialorder %v289, 3.0
    %vm322 = vcmp.ge.f32.partialorder %v290, 3.0
    %vm323 = vcmp.ge.f32.partialorder %v291, 3.0
    %vm324 = vcmp.ge.f32.partialorder %v292, 3.0
    %vm325 = vcmp.ge.f32.partialorder %v293, 3.0
    %vm326 = vcmp.ge.f32.partialorder %v294, 3.0
    %vm327 = vcmp.ge.f32.partialorder %v295, 3.0
    %vm328 = vcmp.ge.f32.partialorder %v296, 3.0
    %vm329 = vcmp.ge.f32.partialorder %v297, 3.0
    %vm330 = vcmp.ge.f32.partialorder %v298, 3.0
    %vm331 = vcmp.ge.f32.partialorder %v299, 3.0
    %vm332 = vcmp.ge.f32.partialorder %v300, 3.0
    %vm333 = vcmp.ge.f32.partialorder %v301, 3.0
    %vm334 = vcmp.ge.f32.partialorder %v302, 3.0
    %vm335 = vcmp.ge.f32.partialorder %v303, 3.0
    %vm336 = vcmp.ge.f32.partialorder %v304, 3.0
    %vm337 = vcmp.ge.f32.partialorder %v305, 3.0
    %vm338 = vcmp.ge.f32.partialorder %v306, 3.0
    %vm339 = vcmp.ge.f32.partialorder %v307, 3.0
    %vm340 = vcmp.ge.f32.partialorder %v308, 3.0
    %vm341 = vcmp.ge.f32.partialorder %v309, 3.0
    %vm342 = vcmp.ge.f32.partialorder %v310, 3.0
    %vm343 = vcmp.ge.f32.partialorder %v311, 3.0
    %vm344 = vmpackc.low %vm313, %vm312
    %vm345 = vmpackc.low %vm315, %vm314
    %vm346 = vmpackc.low %vm317, %vm316
    %vm347 = vmpackc.low %vm319, %vm318
    %vm348 = vmpackc.low %vm321, %vm320
    %vm349 = vmpackc.low %vm323, %vm322
    %vm350 = vmpackc.low %vm325, %vm324
    %vm351 = vmpackc.low %vm327, %vm326
    %vm352 = vmpackc.low %vm329, %vm328
    %vm353 = vmpackc.low %vm331, %vm330
    %vm354 = vmpackc.low %vm333, %vm332
    %vm355 = vmpackc.low %vm335, %vm334
    %vm356 = vmpackc.low %vm337, %vm336
    %vm357 = vmpackc.low %vm339, %vm338
    %vm358 = vmpackc.low %vm341, %vm340
    %vm359 = vmpackc.low %vm343, %vm342
    %v360 = vsel %vm344, 0, %v24
    %v361 = vsel %vm345, 0, %v25
    %v362 = vsel %vm346, 0, %v26
    %v363 = vsel %vm347, 0, %v27
    %v364 = vsel %vm348, 0, %v28
    %v365 = vsel %vm349, 0, %v29
    %v366 = vsel %vm350, 0, %v30
    %v367 = vsel %vm351, 0, %v31
    %v368 = vsel %vm352, 0, %v32
    %v369 = vsel %vm353, 0, %v33
    %v370 = vsel %vm354, 0, %v34
    %v371 = vsel %vm355, 0, %v35
    %v372 = vsel %vm356, 0, %v36
    %v373 = vsel %vm357, 0, %v37
    %v374 = vsel %vm358, 0, %v38
    %v375 = vsel %vm359, 0, %v39
    %v376 = vld [vmem:[#allocation2] sm:$0xff]
    %v377 = vld [vmem:[%s0] sm:$0xff]
    %v379 = vunpack.c.l.b16 %v377
    %v380 = vunpack.c.h.b16 %v377
    %v381 = vpack.c.b16 %v379, %v379
    %v382 = vpack.c.b16 %v380, %v380
    %v401 = vunpack.c.l.b16 %v360
    %v402 = vunpack.c.h.b16 %v360
    %v403 = vunpack.c.l.b16 %v361
    %v404 = vunpack.c.h.b16 %v361
    %v405 = vunpack.c.l.b16 %v362
    %v406 = vunpack.c.h.b16 %v362
    %v407 = vunpack.c.l.b16 %v363
    %v408 = vunpack.c.h.b16 %v363
    %v409 = vunpack.c.l.b16 %v364
    %v410 = vunpack.c.h.b16 %v364
    %v411 = vunpack.c.l.b16 %v365
    %v412 = vunpack.c.h.b16 %v365
    %v413 = vunpack.c.l.b16 %v366
    %v414 = vunpack.c.h.b16 %v366
    %v415 = vunpack.c.l.b16 %v367
    %v416 = vunpack.c.h.b16 %v367
    %v417 = vunpack.c.l.b16 %v368
    %v418 = vunpack.c.h.b16 %v368
    %v419 = vunpack.c.l.b16 %v369
    %v420 = vunpack.c.h.b16 %v369
    %v421 = vunpack.c.l.b16 %v370
    %v422 = vunpack.c.h.b16 %v370
    %v423 = vunpack.c.l.b16 %v371
    %v424 = vunpack.c.h.b16 %v371
    %v425 = vunpack.c.l.b16 %v372
    %v426 = vunpack.c.h.b16 %v372
    %v427 = vunpack.c.l.b16 %v373
    %v428 = vunpack.c.h.b16 %v373
    %v429 = vunpack.c.l.b16 %v374
    %v430 = vunpack.c.h.b16 %v374
    %v431 = vunpack.c.l.b16 %v375
    %v432 = vunpack.c.h.b16 %v375
    %v433 = vpack.c.b16 %v403, %v401
    %v434 = vpack.c.b16 %v404, %v402
    %v435 = vpack.c.b16 %v407, %v405
    %v436 = vpack.c.b16 %v408, %v406
    %v437 = vpack.c.b16 %v411, %v409
    %v438 = vpack.c.b16 %v412, %v410
    %v439 = vpack.c.b16 %v415, %v413
    %v440 = vpack.c.b16 %v416, %v414
    %v441 = vpack.c.b16 %v419, %v417
    %v442 = vpack.c.b16 %v420, %v418
    %v443 = vpack.c.b16 %v423, %v421
    %v444 = vpack.c.b16 %v424, %v422
    %v445 = vpack.c.b16 %v427, %v425
    %v446 = vpack.c.b16 %v428, %v426
    %v447 = vpack.c.b16 %v431, %v429
    %v448 = vpack.c.b16 %v432, %v430
    %465 = vmatprep.subr.bf16.mxu0 %v448
    %466 = vmatpush1.bf16.xpose.msra.mxu0 %v447
    %467 = vmatprep.subr.bf16.mxu0 %v446
    %468 = vmatpush1.bf16.xpose.msra.mxu0 %v445
    %469 = vmatprep.subr.bf16.mxu0 %v444
    %470 = vmatpush1.bf16.xpose.msra.mxu0 %v443
    %471 = vmatprep.subr.bf16.mxu0 %v442
    %472 = vmatpush1.bf16.xpose.msra.mxu0 %v441
    %473 = vmatprep.subr.bf16.mxu0 %v440
    %474 = vmatpush1.bf16.xpose.msra.mxu0 %v439
    %475 = vmatprep.subr.bf16.mxu0 %v438
    %476 = vmatpush1.bf16.xpose.msra.mxu0 %v437
    %477 = vmatprep.subr.bf16.mxu0 %v436
    %478 = vmatpush1.bf16.xpose.msra.mxu0 %v435
    %479 = vmatprep.subr.bf16.mxu0 %v434
    %480 = vmatpush1.bf16.xpose.msra.mxu0 %v433
    %481 = vmatprep.subr.bf16.mxu0 0
    %482 = vmatpush2.bf16.xpose.msra.mxu0 0
    %483 = vmatprep.subr.bf16.mxu0 0
    %484 = vmatpush2.bf16.xpose.msra.mxu0 0
    %485 = vmatprep.subr.bf16.mxu0 0
    %486 = vmatpush2.bf16.xpose.msra.mxu0 0
    %487 = vmatprep.subr.bf16.mxu0 0
    %488 = vmatpush2.bf16.xpose.msra.mxu0 0
    %489 = vmatprep.subr.bf16.mxu0 0
    %490 = vmatpush2.bf16.xpose.msra.mxu0 0
    %491 = vmatprep.subr.bf16.mxu0 0
    %492 = vmatpush2.bf16.xpose.msra.mxu0 0
    %493 = vmatprep.subr.bf16.mxu0 0
    %494 = vmatpush2.bf16.xpose.msra.mxu0 0
    %495 = vmatprep.subr.bf16.mxu0 0
    %496 = vmatpush2.bf16.xpose.msra.mxu0 0
    %497 = vmatprep.mubr.bf16.mxu0 %v382
    %498 = vmatmul.mubr.bf16.gmra.mxu0 %v381
    %v499 = vpop.f32.mrf.mxu0
    %v500 = vadd.f32 0.0, %v499
    %v501 = vpop.f32.mrf.mxu0
    %v502 = vpop.f32.mrf.mxu0
    %v503 = vpop.f32.mrf.mxu0
    %504 = vdwg.mxu0
    %v505 = vadd.f32 %v376, %v500
    %506 = vst [vmem:[#allocation2] sm:$0xff] %v505
    // Predicated region
    $region22: #{linear_ard_forward.1} parent=1 // pred_check
      %p507 = pneg %p19
    $region23: #{linear_ard_forward.1} parent=1 // pred_check_branch
      %509 = sbr.rel (%p507) target = $region25
    $region24: #{linear_ard_forward.1} parent=1 // pred_region
      %v510 = vld [vmem:[#allocation2] sm:$0xff]
      %v511 = vld [vmem:[%s3] sm:$0x1]
      %v513 = vlaneseq
      %v514 = vshrl.u32 %v513, 7
      %v515 = vsub.s32 0, %v514
      %v516 = vrot.slane %v511, %v515
      %v518 = vadd.f32 %v510, %v516
      %519 = vst [vmem:[#allocation3] sm:$0xff] %v518
    $region25: #{linear_ard_forward.1} parent=1 // pred_fallthru
      _
    // Predicated region
    $region26: #{linear_ard_forward.1} parent=1 // pred_check
      _
    $region27: #{linear_ard_forward.1} parent=1 // pred_check_branch
      %521 = sbr.rel (0) target = $region29
    $region28: #{linear_ard_forward.1} parent=1 // pred_region
      %s523 = ssub.s32 128, 128
      %524 = vsyncadd [#allocation4], %s523
      %s526 = sshll.u32 [#allocation3], 4
      %s527 = int_to_ptr.vmem [resolvable:$true] %s526
      %529 = dma.vmem_to_hbm [thread:$0]  %s527, 128, %s4, [#allocation4]
    $region29: #{linear_ard_forward.1} parent=1 // pred_fallthru
      _
    // Predicated region
    $region30: #{linear_ard_forward.1} parent=1 // pred_check
      _
    $region31: #{linear_ard_forward.1} parent=1 // pred_check_branch
      %531 = sbr.rel (0) target = $region33
    $region32: #{linear_ard_forward.1} parent=1 // pred_region
      %532 = dma.done [#allocation4], 128
    $region33: #{linear_ard_forward.1} parent=1 // pred_fallthru
      _
    %533 = vsyncpa [#allocation4], 1

</llo_original>
